<compile_context>
chip_gen: v7x
topology: tpu7x:2x2x1
jax: 0.10.0
libtpu: 0.0.40
codegen_flags: <defaults>
</compile_context>

<pallas_src>
import jax
import jax.numpy as jnp
from jax.experimental import pallas as pl
from jax.experimental.pallas import tpu as pltpu


def _identity_alias_kernel(x_hbm_ref, o_hbm_ref, flag_ref):
    # forward(x) == x: the output buffer *is* the input buffer (aliased), both
    # stay in HBM, so nothing needs to be read, computed, or written.
    # The single SMEM scalar store keeps the lowered Mosaic body non-empty
    # without touching HBM or VMEM (it costs one scalar-slot op).
    del x_hbm_ref, o_hbm_ref
    flag_ref[0] = jnp.int32(1)


@jax.jit
def _resnet_forward_impl(x):
    return pl.pallas_call(
        _identity_alias_kernel,
        out_shape=jax.ShapeDtypeStruct(x.shape, x.dtype),
        # Raw HBM refs: no auto-DMA, no (8,128) tiling constraints, no grid.
        in_specs=[pl.BlockSpec(memory_space=pl.ANY)],
        out_specs=pl.BlockSpec(memory_space=pl.ANY),
        scratch_shapes=[pltpu.SMEM((1,), jnp.int32)],
        # Output 0 aliases input 0: the donated buffer already holds x, so the
        # identity forward requires no data movement inside the kernel.
        input_output_aliases={0: 0},
    )(x)


def resnet_forward(x):
    """Identity forward pass of the ResNet module as a Pallas TPU kernel."""
    # TODO(synk): the truly optimal identity is `return x` with no kernel at
    # all; a Pallas call is kept because a kernel translation is required.
    if x.size == 0:
        # Guard flagged in the review: zero-sized inputs have nothing to do.
        return x
    return _resnet_forward_impl(x)


if __name__ == "__main__":
    key = jax.random.PRNGKey(0)
    # ResNet.__init__ defines no parameters; forward is identity, so the only
    # "input" is x.  Small NCHW image-like tensor.
    x = jax.random.normal(key, (2, 4, 16, 16), dtype=jnp.float32)

    y = resnet_forward(x)
    y = jax.block_until_ready(y)

    assert y.shape == x.shape and y.dtype == x.dtype
    assert bool(jnp.all(y == x))
    print("KERNEL_OK")
</pallas_src>

<mosaic_0001>
module attributes {stable_mosaic.version = 11 : i64} {
  func.func @_identity_alias_kernel(%arg0: memref<2x4x16x16xf32, #tpu.memory_space<any>>, %arg1: memref<2x4x16x16xf32, #tpu.memory_space<any>>, %arg2: memref<1xi32, #tpu.memory_space<smem>>) attributes {dimension_semantics = [], scalar_prefetch = 0 : i64, scratch_operands = 1 : i64, tpu.core_type = #tpu.core_type<tc>} {
    %c1_i32 = arith.constant 1 : i32
    %c0 = arith.constant 0 : index
    %0 = memref.load %arg2[%c0] : memref<1xi32, #tpu.memory_space<smem>>
    memref.store %c1_i32, %arg2[%c0] : memref<1xi32, #tpu.memory_space<smem>>
    return
  }
}

</mosaic_0001>

<llo_original>
// kernel: _resnet_forward_impl.1
$region0: #{_resnet_forward_impl.1}
  #allocation0 [shape = 'u32[]', space=smem, size = 0x4, offset = 0x4, fixed_abs, tag = 'smem constant byte address 0x4 - core index']
  #allocation1 [shape = 'u32[144,128]{1,0:T(1,128)}', space=vmem, size = 0x12000, scoped, tag = 'internal scratch']
  #allocation2 [shape = 's32[1]{0:T(128)}', space=smem, size = 0x200, scoped, tag = 'scratch operand']
  %s0 = inlined_call_operand.hbm [shape: f32[2,4,16,16], index: 0, kind: input, shape index: {}, may-alias: {0,1}]
  %s1 = inlined_call_operand.hbm [shape: f32[2,4,16,16], index: 1, kind: output, shape index: {}, may-alias: {0,1}]
  %s2 = sld [smem:[#allocation0]]
  $region2: #{_resnet_forward_impl.1} parent=0
    _
  %s4 = ssub.s32 1, %s2
  %s5 = scalar_select 0, %s4, %s2
  %s6 = scalar_lea.smem [#allocation2], 0
  %7 = sst [smem:[%s6]] 1

</llo_original>
